<compile_context>
chip_gen: v7x
topology: tpu7x:2x2x1
jax: 0.10.0
libtpu: 0.0.40
codegen_flags: <defaults>
</compile_context>

<pallas_src>
import functools

import jax
import jax.numpy as jnp
from jax.experimental import pallas as pl
from jax.experimental.pallas import tpu as pltpu


def _round_up(x: int, m: int) -> int:
    return (x + m - 1) // m * m


# ------------------------------ fused kernel --------------------------------

def _qnet_fused_kernel(layer_cfg, ws, dp, x_ref, mask_ref, *rest):
    """Entire Q_net forward for one batch element (one grid step).

    layer_cfg : static tuple of (k, cin_padded, cout, pad_top, pad_left)
    ws        : canvas row stride (W + max_k - 1)
    dp        : lane-dense compute width, round_up(H * ws, 128)
    x_ref     : (1, cin_p0, CANVAS) bf16  -- layer-1 zero-padded input canvas
    mask_ref  : (1, dp) f32               -- 1.0 on valid flat positions
                                             (row < H and col < W), else 0.0
    rest      : w_0, b_0, ..., w_{L-1}, b_{L-1}, out_ref[, canvas_scratch]
    """
    num_layers = len(layer_cfg)
    wb = rest[: 2 * num_layers]
    o_ref = rest[2 * num_layers]
    canvas_ref = rest[2 * num_layers + 1] if num_layers > 1 else None

    mask = mask_ref[...]                                     # (1, dp) f32

    for li, (k, cin_p, cout, _pt, _plft) in enumerate(layer_cfg):
        w_ref = wb[2 * li]                                   # (k*k, cout, cin_p) bf16
        b_ref = wb[2 * li + 1]                               # (cout, 1) f32

        # Conv = sum of k*k shifted matmuls over the flat canvas (f32 accumulate).
        # Lane / MXU-N dimension is the large flattened-spatial axis (128-dense).
        acc = jnp.zeros((cout, dp), jnp.float32)
        for dh in range(k):
            for dw in range(k):
                off = dh * ws + dw                           # static lane offset
                if li == 0:
                    xs = x_ref[0, :, off:off + dp]           # (cin_p, dp) bf16
                else:
                    xs = canvas_ref[0:cin_p, off:off + dp]   # (cin_p, dp) bf16
                acc = acc + jnp.dot(w_ref[dh * k + dw], xs,
                                    preferred_element_type=jnp.float32)
        acc = acc + b_ref[...]                               # (cout, 1) broadcast

        if li < num_layers - 1:
            # ReLU, zero the out-of-domain lanes, then lay the activation into
            # the next layer's zero-padded input canvas (VMEM only, full-width
            # unmasked lane stores).
            act = jnp.maximum(acc, 0.0) * mask
            nxt_pt, nxt_pl = layer_cfg[li + 1][3], layer_cfg[li + 1][4]
            shift = nxt_pt * ws + nxt_pl
            canvas_ref[...] = jnp.zeros_like(canvas_ref)
            canvas_ref[0:cout, shift:shift + dp] = act.astype(canvas_ref.dtype)
        else:
            # Fused SoftmaxPlanar epilogue over the valid (H, W) positions
            # of each output channel plane.
            logits = jnp.where(mask > 0.5, acc, -1e30)
            m = jnp.max(logits, axis=-1, keepdims=True)
            e = jnp.exp(logits - m) * mask                   # exact 0 off-domain
            ssum = jnp.sum(e, axis=-1, keepdims=True)
            r = pl.reciprocal(ssum, approx=True)             # EUP slot
            r = r * (2.0 - ssum * r)                         # Newton step -> f32 accurate
            o_ref[0] = (e * r).astype(o_ref.dtype)


# ------------------------------ wrapper --------------------------------------

def q_net_forward(x_nchw, params, kernel_sizes):
    """Q_net forward.  x_nchw: (N, 3, H, W) -> (N, 1, H, W), softmaxed per plane."""
    kernel_sizes = tuple(int(k) for k in kernel_sizes)
    n, cin0, h, w = x_nchw.shape
    num_layers = len(kernel_sizes)
    max_k = max(kernel_sizes)

    ws = w + max_k - 1                       # common canvas row stride
    hs = h + max_k - 1                       # canvas rows holding (padded) data
    d = h * ws                               # flat conv output domain per plane
    d_pad = _round_up(d, 128)                # lane-dense compute / store width
    canvas_len = _round_up(d_pad + (max_k - 1) * (ws + 1), 128)

    # -------- static per-layer config + matmul operand preparation ----------
    layer_cfg = []
    flat_args = []
    cin = cin0
    for li, k in enumerate(kernel_sizes):
        w_l, b_l = params[li]                # (cout, cin, k, k), (cout,)
        cout = int(w_l.shape[0])
        cin_p = _round_up(cin, 8)            # zero-pad the K dim (robust + aligned)
        pad_top, pad_left = (k - 1) // 2, (k - 1) // 2   # ZeroPad2d top/left
        layer_cfg.append((k, cin_p, cout, pad_top, pad_left))
        # taps ordered dh*k + dw; each tap is a (cout, cin_p) matmul LHS
        w_taps = jnp.transpose(w_l, (2, 3, 0, 1)).reshape(k * k, cout, cin)
        w_taps = jnp.pad(w_taps, ((0, 0), (0, 0), (0, cin_p - cin)))
        flat_args.append(w_taps.astype(jnp.bfloat16))
        flat_args.append(b_l.reshape(cout, 1).astype(jnp.float32))
        cin = cout
    layer_cfg = tuple(layer_cfg)
    cin_p0 = layer_cfg[0][1]
    cout_last = layer_cfg[-1][2]

    # -------- layer-1 input canvas: zero-pad to (hs, ws), flatten on lanes ---
    pt1, pl1 = layer_cfg[0][3], layer_cfg[0][4]
    xp = jnp.pad(x_nchw, ((0, 0), (0, 0),
                          (pt1, hs - h - pt1), (pl1, ws - w - pl1)))
    xc = xp.reshape(n, cin0, hs * ws)
    xc = jnp.pad(xc, ((0, 0), (0, cin_p0 - cin0), (0, canvas_len - hs * ws)))
    xc = xc.astype(jnp.bfloat16)

    # 1.0 on valid flat positions (index < H*ws and column < W), else 0.0
    idx = jnp.arange(d_pad, dtype=jnp.int32)
    colmask = ((idx < d) & ((idx % ws) < w)).astype(jnp.float32).reshape(1, d_pad)

    # -------- one fused pallas_call, grid over batch --------------------------
    in_specs = [
        pl.BlockSpec((1, cin_p0, canvas_len), lambda i: (i, 0, 0)),
        pl.BlockSpec((1, d_pad), lambda i: (0, 0)),
    ]
    for (k, cin_p, cout, _, _) in layer_cfg:
        in_specs.append(pl.BlockSpec((k * k, cout, cin_p), lambda i: (0, 0, 0)))
        in_specs.append(pl.BlockSpec((cout, 1), lambda i: (0, 0)))

    scratch_shapes = []
    if num_layers > 1:
        c_scr = max(cfg[1] for cfg in layer_cfg[1:])   # max intermediate cin (padded)
        scratch_shapes.append(pltpu.VMEM((c_scr, canvas_len), jnp.bfloat16))

    out_flat = pl.pallas_call(
        functools.partial(_qnet_fused_kernel, layer_cfg, ws, d_pad),
        out_shape=jax.ShapeDtypeStruct((n, cout_last, d_pad), jnp.float32),
        grid=(n,),
        in_specs=in_specs,
        out_specs=pl.BlockSpec((1, cout_last, d_pad), lambda i: (i, 0, 0)),
        scratch_shapes=scratch_shapes,
        compiler_params=pltpu.CompilerParams(
            dimension_semantics=("parallel",)),   # v7x: both TensorCores split batch
    )(xc, colmask, *flat_args)

    # Strip lane padding + right-pad columns of the canvas rows; return NCHW.
    out = out_flat[:, :, :d].reshape(n, cout_last, h, ws)[:, :, :, :w]
    return out


# --------------------------------- params ------------------------------------

def init_q_net_params(key, channels, kernel_sizes):
    """Deterministic PyTorch-style uniform init of the conv weights/biases."""
    if channels[0] != 3 or channels[-1] != 1:
        raise ValueError(
            f"Q net must have 3 input and 1 output channel, not {channels} channels."
        )
    params = []
    for i, k in enumerate(kernel_sizes):
        cin, cout = channels[i], channels[i + 1]
        key, wk, bk = jax.random.split(key, 3)
        bound = 1.0 / float(cin * k * k) ** 0.5
        wgt = jax.random.uniform(wk, (cout, cin, k, k), jnp.float32, -bound, bound)
        b = jax.random.uniform(bk, (cout,), jnp.float32, -bound, bound)
        params.append((wgt, b))
    return params


# ----------------------------------- main -------------------------------------

if __name__ == "__main__":
    channels = [3, 8, 1]
    kernel_sizes = [3, 2]

    key = jax.random.PRNGKey(0)
    kx, kp = jax.random.split(key)

    batch, height, width = 2, 8, 8
    x = jax.random.normal(kx, (batch, channels[0], height, width), jnp.float32)
    params = init_q_net_params(kp, channels, kernel_sizes)

    fwd = jax.jit(lambda xx, pp: q_net_forward(xx, pp, kernel_sizes))
    out = jax.block_until_ready(fwd(x, params))

    assert out.shape == (batch, 1, height, width), out.shape
    # SoftmaxPlanar: every (H, W) plane is non-negative and sums to 1.
    plane_sums = jnp.sum(out.reshape(batch, -1), axis=-1)
    assert bool(jnp.all(jnp.abs(plane_sums - 1.0) < 1e-4)), plane_sums
    assert bool(jnp.all(out >= 0.0))

    print("KERNEL_OK")
</pallas_src>

<mosaic_0001>
module attributes {stable_mosaic.version = 11 : i64} {
  func.func @_qnet_fused_kernel(%arg0: i32, %arg1: memref<1x8x256xbf16, #tpu.memory_space<vmem>>, %arg2: memref<1x128xf32, #tpu.memory_space<vmem>>, %arg3: memref<9x8x8xbf16, #tpu.memory_space<vmem>>, %arg4: memref<8x1xf32, #tpu.memory_space<vmem>>, %arg5: memref<4x1x8xbf16, #tpu.memory_space<vmem>>, %arg6: memref<1x1xf32, #tpu.memory_space<vmem>>, %arg7: memref<1x1x128xf32, #tpu.memory_space<vmem>>, %arg8: memref<8x256xbf16, #tpu.memory_space<vmem>>) attributes {dimension_semantics = [#tpu.dimension_semantics<parallel>], iteration_bounds = array<i64: 2>, scalar_prefetch = 0 : i64, scratch_operands = 1 : i64, tpu.core_type = #tpu.core_type<tc>, window_params = [{transform_indices = @transform_0, window_bounds = array<i64: 1, 8, 256>}, {pipeline_mode = #tpu.pipeline_mode<synchronous>, transform_indices = @transform_1, window_bounds = array<i64: 1, 128>}, {pipeline_mode = #tpu.pipeline_mode<synchronous>, transform_indices = @transform_2, window_bounds = array<i64: 9, 8, 8>}, {pipeline_mode = #tpu.pipeline_mode<synchronous>, transform_indices = @transform_3, window_bounds = array<i64: 8, 1>}, {pipeline_mode = #tpu.pipeline_mode<synchronous>, transform_indices = @transform_4, window_bounds = array<i64: 4, 1, 8>}, {pipeline_mode = #tpu.pipeline_mode<synchronous>, transform_indices = @transform_5, window_bounds = array<i64: 1, 1>}, {transform_indices = @transform_6, window_bounds = array<i64: 1, 1, 128>}]} {
    %c0 = arith.constant 0 : index
    %c0_0 = arith.constant 0 : index
    %0 = vector.load %arg2[%c0, %c0_0] : memref<1x128xf32, #tpu.memory_space<vmem>>, vector<1x128xf32>
    %cst = arith.constant 0.000000e+00 : f32
    %1 = vector.broadcast %cst : f32 to vector<8x128xf32>
    %c0_1 = arith.constant 0 : index
    %c0_2 = arith.constant 0 : index
    %c0_3 = arith.constant 0 : index
    %2 = vector.load %arg1[%c0_1, %c0_2, %c0_3] : memref<1x8x256xbf16, #tpu.memory_space<vmem>>, vector<1x8x128xbf16>
    %3 = vector.shape_cast %2 : vector<1x8x128xbf16> to vector<8x128xbf16>
    %c0_4 = arith.constant 0 : index
    %c0_5 = arith.constant 0 : index
    %c0_6 = arith.constant 0 : index
    %4 = vector.load %arg3[%c0_4, %c0_5, %c0_6] : memref<9x8x8xbf16, #tpu.memory_space<vmem>>, vector<1x8x8xbf16>
    %5 = vector.shape_cast %4 : vector<1x8x8xbf16> to vector<8x8xbf16>
    %cst_7 = arith.constant dense<0.000000e+00> : vector<8x128xf32>
    %6 = tpu.matmul %5, %3, %cst_7 {dimension_numbers = #tpu.dot_dimension_numbers<[1], [0], [0], [1], [0, 0, 1, 1], [], []>} : vector<8x8xbf16>, vector<8x128xbf16>, vector<8x128xf32> -> vector<8x128xf32>
    %7 = arith.addf %1, %6 : vector<8x128xf32>
    %c0_8 = arith.constant 0 : index
    %c0_9 = arith.constant 0 : index
    %c1 = arith.constant 1 : index
    %8 = vector.load %arg1[%c0_8, %c0_9, %c1] : memref<1x8x256xbf16, #tpu.memory_space<vmem>>, vector<1x8x128xbf16>
    %9 = vector.shape_cast %8 : vector<1x8x128xbf16> to vector<8x128xbf16>
    %c1_10 = arith.constant 1 : index
    %c0_11 = arith.constant 0 : index
    %c0_12 = arith.constant 0 : index
    %10 = vector.load %arg3[%c1_10, %c0_11, %c0_12] : memref<9x8x8xbf16, #tpu.memory_space<vmem>>, vector<1x8x8xbf16>
    %11 = vector.shape_cast %10 : vector<1x8x8xbf16> to vector<8x8xbf16>
    %cst_13 = arith.constant dense<0.000000e+00> : vector<8x128xf32>
    %12 = tpu.matmul %11, %9, %cst_13 {dimension_numbers = #tpu.dot_dimension_numbers<[1], [0], [0], [1], [0, 0, 1, 1], [], []>} : vector<8x8xbf16>, vector<8x128xbf16>, vector<8x128xf32> -> vector<8x128xf32>
    %13 = arith.addf %7, %12 : vector<8x128xf32>
    %c0_14 = arith.constant 0 : index
    %c0_15 = arith.constant 0 : index
    %c2 = arith.constant 2 : index
    %14 = vector.load %arg1[%c0_14, %c0_15, %c2] : memref<1x8x256xbf16, #tpu.memory_space<vmem>>, vector<1x8x128xbf16>
    %15 = vector.shape_cast %14 : vector<1x8x128xbf16> to vector<8x128xbf16>
    %c2_16 = arith.constant 2 : index
    %c0_17 = arith.constant 0 : index
    %c0_18 = arith.constant 0 : index
    %16 = vector.load %arg3[%c2_16, %c0_17, %c0_18] : memref<9x8x8xbf16, #tpu.memory_space<vmem>>, vector<1x8x8xbf16>
    %17 = vector.shape_cast %16 : vector<1x8x8xbf16> to vector<8x8xbf16>
    %cst_19 = arith.constant dense<0.000000e+00> : vector<8x128xf32>
    %18 = tpu.matmul %17, %15, %cst_19 {dimension_numbers = #tpu.dot_dimension_numbers<[1], [0], [0], [1], [0, 0, 1, 1], [], []>} : vector<8x8xbf16>, vector<8x128xbf16>, vector<8x128xf32> -> vector<8x128xf32>
    %19 = arith.addf %13, %18 : vector<8x128xf32>
    %c0_20 = arith.constant 0 : index
    %c0_21 = arith.constant 0 : index
    %c10 = arith.constant 10 : index
    %20 = vector.load %arg1[%c0_20, %c0_21, %c10] : memref<1x8x256xbf16, #tpu.memory_space<vmem>>, vector<1x8x128xbf16>
    %21 = vector.shape_cast %20 : vector<1x8x128xbf16> to vector<8x128xbf16>
    %c3 = arith.constant 3 : index
    %c0_22 = arith.constant 0 : index
    %c0_23 = arith.constant 0 : index
    %22 = vector.load %arg3[%c3, %c0_22, %c0_23] : memref<9x8x8xbf16, #tpu.memory_space<vmem>>, vector<1x8x8xbf16>
    %23 = vector.shape_cast %22 : vector<1x8x8xbf16> to vector<8x8xbf16>
    %cst_24 = arith.constant dense<0.000000e+00> : vector<8x128xf32>
    %24 = tpu.matmul %23, %21, %cst_24 {dimension_numbers = #tpu.dot_dimension_numbers<[1], [0], [0], [1], [0, 0, 1, 1], [], []>} : vector<8x8xbf16>, vector<8x128xbf16>, vector<8x128xf32> -> vector<8x128xf32>
    %25 = arith.addf %19, %24 : vector<8x128xf32>
    %c0_25 = arith.constant 0 : index
    %c0_26 = arith.constant 0 : index
    %c11 = arith.constant 11 : index
    %26 = vector.load %arg1[%c0_25, %c0_26, %c11] : memref<1x8x256xbf16, #tpu.memory_space<vmem>>, vector<1x8x128xbf16>
    %27 = vector.shape_cast %26 : vector<1x8x128xbf16> to vector<8x128xbf16>
    %c4 = arith.constant 4 : index
    %c0_27 = arith.constant 0 : index
    %c0_28 = arith.constant 0 : index
    %28 = vector.load %arg3[%c4, %c0_27, %c0_28] : memref<9x8x8xbf16, #tpu.memory_space<vmem>>, vector<1x8x8xbf16>
    %29 = vector.shape_cast %28 : vector<1x8x8xbf16> to vector<8x8xbf16>
    %cst_29 = arith.constant dense<0.000000e+00> : vector<8x128xf32>
    %30 = tpu.matmul %29, %27, %cst_29 {dimension_numbers = #tpu.dot_dimension_numbers<[1], [0], [0], [1], [0, 0, 1, 1], [], []>} : vector<8x8xbf16>, vector<8x128xbf16>, vector<8x128xf32> -> vector<8x128xf32>
    %31 = arith.addf %25, %30 : vector<8x128xf32>
    %c0_30 = arith.constant 0 : index
    %c0_31 = arith.constant 0 : index
    %c12 = arith.constant 12 : index
    %32 = vector.load %arg1[%c0_30, %c0_31, %c12] : memref<1x8x256xbf16, #tpu.memory_space<vmem>>, vector<1x8x128xbf16>
    %33 = vector.shape_cast %32 : vector<1x8x128xbf16> to vector<8x128xbf16>
    %c5 = arith.constant 5 : index
    %c0_32 = arith.constant 0 : index
    %c0_33 = arith.constant 0 : index
    %34 = vector.load %arg3[%c5, %c0_32, %c0_33] : memref<9x8x8xbf16, #tpu.memory_space<vmem>>, vector<1x8x8xbf16>
    %35 = vector.shape_cast %34 : vector<1x8x8xbf16> to vector<8x8xbf16>
    %cst_34 = arith.constant dense<0.000000e+00> : vector<8x128xf32>
    %36 = tpu.matmul %35, %33, %cst_34 {dimension_numbers = #tpu.dot_dimension_numbers<[1], [0], [0], [1], [0, 0, 1, 1], [], []>} : vector<8x8xbf16>, vector<8x128xbf16>, vector<8x128xf32> -> vector<8x128xf32>
    %37 = arith.addf %31, %36 : vector<8x128xf32>
    %c0_35 = arith.constant 0 : index
    %c0_36 = arith.constant 0 : index
    %c20 = arith.constant 20 : index
    %38 = vector.load %arg1[%c0_35, %c0_36, %c20] : memref<1x8x256xbf16, #tpu.memory_space<vmem>>, vector<1x8x128xbf16>
    %39 = vector.shape_cast %38 : vector<1x8x128xbf16> to vector<8x128xbf16>
    %c6 = arith.constant 6 : index
    %c0_37 = arith.constant 0 : index
    %c0_38 = arith.constant 0 : index
    %40 = vector.load %arg3[%c6, %c0_37, %c0_38] : memref<9x8x8xbf16, #tpu.memory_space<vmem>>, vector<1x8x8xbf16>
    %41 = vector.shape_cast %40 : vector<1x8x8xbf16> to vector<8x8xbf16>
    %cst_39 = arith.constant dense<0.000000e+00> : vector<8x128xf32>
    %42 = tpu.matmul %41, %39, %cst_39 {dimension_numbers = #tpu.dot_dimension_numbers<[1], [0], [0], [1], [0, 0, 1, 1], [], []>} : vector<8x8xbf16>, vector<8x128xbf16>, vector<8x128xf32> -> vector<8x128xf32>
    %43 = arith.addf %37, %42 : vector<8x128xf32>
    %c0_40 = arith.constant 0 : index
    %c0_41 = arith.constant 0 : index
    %c21 = arith.constant 21 : index
    %44 = vector.load %arg1[%c0_40, %c0_41, %c21] : memref<1x8x256xbf16, #tpu.memory_space<vmem>>, vector<1x8x128xbf16>
    %45 = vector.shape_cast %44 : vector<1x8x128xbf16> to vector<8x128xbf16>
    %c7 = arith.constant 7 : index
    %c0_42 = arith.constant 0 : index
    %c0_43 = arith.constant 0 : index
    %46 = vector.load %arg3[%c7, %c0_42, %c0_43] : memref<9x8x8xbf16, #tpu.memory_space<vmem>>, vector<1x8x8xbf16>
    %47 = vector.shape_cast %46 : vector<1x8x8xbf16> to vector<8x8xbf16>
    %cst_44 = arith.constant dense<0.000000e+00> : vector<8x128xf32>
    %48 = tpu.matmul %47, %45, %cst_44 {dimension_numbers = #tpu.dot_dimension_numbers<[1], [0], [0], [1], [0, 0, 1, 1], [], []>} : vector<8x8xbf16>, vector<8x128xbf16>, vector<8x128xf32> -> vector<8x128xf32>
    %49 = arith.addf %43, %48 : vector<8x128xf32>
    %c0_45 = arith.constant 0 : index
    %c0_46 = arith.constant 0 : index
    %c22 = arith.constant 22 : index
    %50 = vector.load %arg1[%c0_45, %c0_46, %c22] : memref<1x8x256xbf16, #tpu.memory_space<vmem>>, vector<1x8x128xbf16>
    %51 = vector.shape_cast %50 : vector<1x8x128xbf16> to vector<8x128xbf16>
    %c8 = arith.constant 8 : index
    %c0_47 = arith.constant 0 : index
    %c0_48 = arith.constant 0 : index
    %52 = vector.load %arg3[%c8, %c0_47, %c0_48] : memref<9x8x8xbf16, #tpu.memory_space<vmem>>, vector<1x8x8xbf16>
    %53 = vector.shape_cast %52 : vector<1x8x8xbf16> to vector<8x8xbf16>
    %cst_49 = arith.constant dense<0.000000e+00> : vector<8x128xf32>
    %54 = tpu.matmul %53, %51, %cst_49 {dimension_numbers = #tpu.dot_dimension_numbers<[1], [0], [0], [1], [0, 0, 1, 1], [], []>} : vector<8x8xbf16>, vector<8x128xbf16>, vector<8x128xf32> -> vector<8x128xf32>
    %55 = arith.addf %49, %54 : vector<8x128xf32>
    %c0_50 = arith.constant 0 : index
    %c0_51 = arith.constant 0 : index
    %56 = vector.load %arg4[%c0_50, %c0_51] : memref<8x1xf32, #tpu.memory_space<vmem>>, vector<8x1xf32>
    %57 = vector.broadcast %56 : vector<8x1xf32> to vector<8x128xf32>
    %58 = arith.addf %55, %57 : vector<8x128xf32>
    %cst_52 = arith.constant 0.000000e+00 : f32
    %59 = vector.broadcast %cst_52 : f32 to vector<8x128xf32>
    %60 = arith.maximumf %58, %59 : vector<8x128xf32>
    %61 = vector.broadcast %0 : vector<1x128xf32> to vector<8x128xf32>
    %62 = arith.mulf %60, %61 : vector<8x128xf32>
    %cst_53 = arith.constant 0.000000e+00 : bf16
    %63 = vector.broadcast %cst_53 : bf16 to vector<8x256xbf16>
    %c0_54 = arith.constant 0 : index
    %c0_55 = arith.constant 0 : index
    %64 = vector.load %arg8[%c0_54, %c0_55] : memref<8x256xbf16, #tpu.memory_space<vmem>>, vector<8x256xbf16>
    tpu.vector_store %arg8[%c0_54, %c0_55], %63 {strides = array<i32>} : memref<8x256xbf16, #tpu.memory_space<vmem>>, vector<8x256xbf16>,
    %65 = arith.truncf %62 : vector<8x128xf32> to vector<8x128xbf16>
    %c0_56 = arith.constant 0 : index
    %c0_57 = arith.constant 0 : index
    %66 = vector.load %arg8[%c0_56, %c0_57] : memref<8x256xbf16, #tpu.memory_space<vmem>>, vector<8x128xbf16>
    tpu.vector_store %arg8[%c0_56, %c0_57], %65 {strides = array<i32>} : memref<8x256xbf16, #tpu.memory_space<vmem>>, vector<8x128xbf16>,
    %cst_58 = arith.constant 0.000000e+00 : f32
    %67 = vector.broadcast %cst_58 : f32 to vector<1x128xf32>
    %c0_59 = arith.constant 0 : index
    %c0_60 = arith.constant 0 : index
    %68 = vector.load %arg8[%c0_59, %c0_60] : memref<8x256xbf16, #tpu.memory_space<vmem>>, vector<8x128xbf16>
    %c0_61 = arith.constant 0 : index
    %c0_62 = arith.constant 0 : index
    %c0_63 = arith.constant 0 : index
    %69 = vector.load %arg5[%c0_61, %c0_62, %c0_63] : memref<4x1x8xbf16, #tpu.memory_space<vmem>>, vector<1x1x8xbf16>
    %70 = vector.shape_cast %69 : vector<1x1x8xbf16> to vector<1x8xbf16>
    %cst_64 = arith.constant dense<0.000000e+00> : vector<1x128xf32>
    %71 = tpu.matmul %70, %68, %cst_64 {dimension_numbers = #tpu.dot_dimension_numbers<[1], [0], [0], [1], [0, 0, 1, 1], [], []>} : vector<1x8xbf16>, vector<8x128xbf16>, vector<1x128xf32> -> vector<1x128xf32>
    %72 = arith.addf %67, %71 : vector<1x128xf32>
    %c0_65 = arith.constant 0 : index
    %c1_66 = arith.constant 1 : index
    %73 = vector.load %arg8[%c0_65, %c1_66] : memref<8x256xbf16, #tpu.memory_space<vmem>>, vector<8x128xbf16>
    %c1_67 = arith.constant 1 : index
    %c0_68 = arith.constant 0 : index
    %c0_69 = arith.constant 0 : index
    %74 = vector.load %arg5[%c1_67, %c0_68, %c0_69] : memref<4x1x8xbf16, #tpu.memory_space<vmem>>, vector<1x1x8xbf16>
    %75 = vector.shape_cast %74 : vector<1x1x8xbf16> to vector<1x8xbf16>
    %cst_70 = arith.constant dense<0.000000e+00> : vector<1x128xf32>
    %76 = tpu.matmul %75, %73, %cst_70 {dimension_numbers = #tpu.dot_dimension_numbers<[1], [0], [0], [1], [0, 0, 1, 1], [], []>} : vector<1x8xbf16>, vector<8x128xbf16>, vector<1x128xf32> -> vector<1x128xf32>
    %77 = arith.addf %72, %76 : vector<1x128xf32>
    %c0_71 = arith.constant 0 : index
    %c10_72 = arith.constant 10 : index
    %78 = vector.load %arg8[%c0_71, %c10_72] : memref<8x256xbf16, #tpu.memory_space<vmem>>, vector<8x128xbf16>
    %c2_73 = arith.constant 2 : index
    %c0_74 = arith.constant 0 : index
    %c0_75 = arith.constant 0 : index
    %79 = vector.load %arg5[%c2_73, %c0_74, %c0_75] : memref<4x1x8xbf16, #tpu.memory_space<vmem>>, vector<1x1x8xbf16>
    %80 = vector.shape_cast %79 : vector<1x1x8xbf16> to vector<1x8xbf16>
    %cst_76 = arith.constant dense<0.000000e+00> : vector<1x128xf32>
    %81 = tpu.matmul %80, %78, %cst_76 {dimension_numbers = #tpu.dot_dimension_numbers<[1], [0], [0], [1], [0, 0, 1, 1], [], []>} : vector<1x8xbf16>, vector<8x128xbf16>, vector<1x128xf32> -> vector<1x128xf32>
    %82 = arith.addf %77, %81 : vector<1x128xf32>
    %c0_77 = arith.constant 0 : index
    %c11_78 = arith.constant 11 : index
    %83 = vector.load %arg8[%c0_77, %c11_78] : memref<8x256xbf16, #tpu.memory_space<vmem>>, vector<8x128xbf16>
    %c3_79 = arith.constant 3 : index
    %c0_80 = arith.constant 0 : index
    %c0_81 = arith.constant 0 : index
    %84 = vector.load %arg5[%c3_79, %c0_80, %c0_81] : memref<4x1x8xbf16, #tpu.memory_space<vmem>>, vector<1x1x8xbf16>
    %85 = vector.shape_cast %84 : vector<1x1x8xbf16> to vector<1x8xbf16>
    %cst_82 = arith.constant dense<0.000000e+00> : vector<1x128xf32>
    %86 = tpu.matmul %85, %83, %cst_82 {dimension_numbers = #tpu.dot_dimension_numbers<[1], [0], [0], [1], [0, 0, 1, 1], [], []>} : vector<1x8xbf16>, vector<8x128xbf16>, vector<1x128xf32> -> vector<1x128xf32>
    %87 = arith.addf %82, %86 : vector<1x128xf32>
    %c0_83 = arith.constant 0 : index
    %c0_84 = arith.constant 0 : index
    %88 = vector.load %arg6[%c0_83, %c0_84] : memref<1x1xf32, #tpu.memory_space<vmem>>, vector<1x1xf32>
    %89 = vector.broadcast %88 : vector<1x1xf32> to vector<1x128xf32>
    %90 = arith.addf %87, %89 : vector<1x128xf32>
    %cst_85 = arith.constant 5.000000e-01 : f32
    %91 = vector.broadcast %cst_85 : f32 to vector<1x128xf32>
    %92 = arith.cmpf ogt, %0, %91 : vector<1x128xf32>
    %cst_86 = arith.constant -1.000000e+30 : f32
    %93 = vector.broadcast %cst_86 : f32 to vector<1x128xf32>
    %94 = arith.select %92, %90, %93 : vector<1x128xi1>, vector<1x128xf32>
    %cst_87 = arith.constant dense<0xFF800000> : vector<1xf32>
    %95 = vector.multi_reduction <maximumf>, %94, %cst_87 [1] : vector<1x128xf32> to vector<1xf32>
    %96 = vector.shape_cast %95 : vector<1xf32> to vector<1x1xf32>
    %97 = vector.broadcast %96 : vector<1x1xf32> to vector<1x128xf32>
    %98 = arith.subf %94, %97 : vector<1x128xf32>
    %99 = math.exp %98 : vector<1x128xf32>
    %100 = arith.mulf %99, %0 : vector<1x128xf32>
    %cst_88 = arith.constant dense<0.000000e+00> : vector<1xf32>
    %101 = vector.multi_reduction <add>, %100, %cst_88 [1] : vector<1x128xf32> to vector<1xf32>
    %102 = vector.shape_cast %101 : vector<1xf32> to vector<1x1xf32>
    %103 = tpu.reciprocal %102 {approx = true} : vector<1x1xf32> -> vector<1x1xf32>
    %104 = arith.mulf %102, %103 : vector<1x1xf32>
    %cst_89 = arith.constant 2.000000e+00 : f32
    %105 = vector.broadcast %cst_89 : f32 to vector<1x1xf32>
    %106 = arith.subf %105, %104 : vector<1x1xf32>
    %107 = arith.mulf %103, %106 : vector<1x1xf32>
    %108 = vector.broadcast %107 : vector<1x1xf32> to vector<1x128xf32>
    %109 = arith.mulf %100, %108 : vector<1x128xf32>
    %c0_90 = arith.constant 0 : index
    %c0_91 = arith.constant 0 : index
    %c0_92 = arith.constant 0 : index
    %110 = vector.load %arg7[%c0_90, %c0_91, %c0_92] : memref<1x1x128xf32, #tpu.memory_space<vmem>>, vector<1x1x128xf32>
    %111 = vector.shape_cast %110 : vector<1x1x128xf32> to vector<1x128xf32>
    %112 = vector.shape_cast %109 : vector<1x128xf32> to vector<1x1x128xf32>
    tpu.vector_store %arg7[%c0_90, %c0_91, %c0_92], %112 {strides = array<i32>} : memref<1x1x128xf32, #tpu.memory_space<vmem>>, vector<1x1x128xf32>,
    return
  }
  func.func @transform_0(%arg0: i32) -> (i32, i32, i32) {
    %c0_i32 = arith.constant 0 : i32
    %c0_i32_0 = arith.constant 0 : i32
    %c0_i32_1 = arith.constant 0 : i32
    return %arg0, %c0_i32, %c0_i32_0 : i32, i32, i32
  }
  func.func @transform_1(%arg0: i32) -> (i32, i32) {
    %c0_i32 = arith.constant 0 : i32
    %c0_i32_0 = arith.constant 0 : i32
    %c0_i32_1 = arith.constant 0 : i32
    return %c0_i32, %c0_i32_0 : i32, i32
  }
  func.func @transform_2(%arg0: i32) -> (i32, i32, i32) {
    %c0_i32 = arith.constant 0 : i32
    %c0_i32_0 = arith.constant 0 : i32
    %c0_i32_1 = arith.constant 0 : i32
    %c0_i32_2 = arith.constant 0 : i32
    return %c0_i32, %c0_i32_0, %c0_i32_1 : i32, i32, i32
  }
  func.func @transform_3(%arg0: i32) -> (i32, i32) {
    %c0_i32 = arith.constant 0 : i32
    %c0_i32_0 = arith.constant 0 : i32
    %c0_i32_1 = arith.constant 0 : i32
    return %c0_i32, %c0_i32_0 : i32, i32
  }
  func.func @transform_4(%arg0: i32) -> (i32, i32, i32) {
    %c0_i32 = arith.constant 0 : i32
    %c0_i32_0 = arith.constant 0 : i32
    %c0_i32_1 = arith.constant 0 : i32
    %c0_i32_2 = arith.constant 0 : i32
    return %c0_i32, %c0_i32_0, %c0_i32_1 : i32, i32, i32
  }
  func.func @transform_5(%arg0: i32) -> (i32, i32) {
    %c0_i32 = arith.constant 0 : i32
    %c0_i32_0 = arith.constant 0 : i32
    %c0_i32_1 = arith.constant 0 : i32
    return %c0_i32, %c0_i32_0 : i32, i32
  }
  func.func @transform_6(%arg0: i32) -> (i32, i32, i32) {
    %c0_i32 = arith.constant 0 : i32
    %c0_i32_0 = arith.constant 0 : i32
    %c0_i32_1 = arith.constant 0 : i32
    return %arg0, %c0_i32, %c0_i32_0 : i32, i32, i32
  }
}

</mosaic_0001>

<llo_original>
// kernel: _lambda_.1
$region0: #{_lambda_.1}
  #allocation0 [shape = 'u32[]', space=smem, size = 0x4, offset = 0x4, fixed_abs, tag = 'smem constant byte address 0x4 - core index']
  #allocation1 [shape = 'u32[144,128]{1,0:T(1,128)}', space=vmem, size = 0x12000, scoped, tag = 'internal scratch']
  #allocation2 [shape = 'bf16[8,256]{1,0:T(8,128)(2,1)}', space=vmem, size = 0x1000, scoped, tag = 'scratch operand']
  #allocation3 [shape = 'f32[1,1]{1,0:T(1,128)S(1)}', space=vmem, size = 0x200, scoped, tag = 'scoped memory for _lambda_.1']
  %s0 = inlined_call_operand.vmem [shape: bf16[2,8,256], index: 0, kind: input, shape index: {}]
  %s1 = inlined_call_operand.vmem [shape: f32[1,128], index: 1, kind: input, shape index: {}]
  %s2 = inlined_call_operand.vmem [shape: bf16[9,8,8], index: 2, kind: input, shape index: {}]
  %s3 = inlined_call_operand.vmem [shape: f32[8,1], index: 3, kind: input, shape index: {}]
  %s4 = inlined_call_operand.vmem [shape: bf16[4,1,8], index: 4, kind: input, shape index: {}]
  %s5 = inlined_call_operand.<no memory space> [shape: f32[1,1], index: 5, kind: input, shape index: {}]
  %s6 = inlined_call_operand.vmem [shape: f32[2,1,128], index: 6, kind: output, shape index: {}]
  %s7 = sld [smem:[#allocation0]]
  $region57: #{_lambda_.1} parent=0
    _
  %s9 = ssub.s32 1, %s7
  %s10 = scalar_select 0, %s9, %s7
  %v11 = vstv %s5
  %12 = vst [vmem:[#allocation3] sm:$0x1] %v11
  loop: start=0, step=1, limit=4
  $region2: #{_lambda_.1} parent=0 // loop_pre_header
    _
  $region3: #{_lambda_.1} parent=0 // loop_header
    %s14 = sphi 0, %s18
    %p15 = scmp.ge.s32.totalorder %s14, 4
    %s24 = sphi 0, %s26
    %s27 = sphi 0, %s24
    %s28 = sphi 0, %s27
    %s44 = sphi 0, %s28
    %s48 = sphi 0, %s48
    %s50 = sphi 0, %s48
    %s51 = sphi 0, %s50
    %s65 = sphi 0, %s51
    %s69 = sphi 0, %s69
    %s71 = sphi 0, %s69
    %s72 = sphi 0, %s71
    %s86 = sphi 0, %s72
    %s90 = sphi 0, %s90
    %s92 = sphi 0, %s90
    %s93 = sphi 0, %s92
    %s107 = sphi 0, %s93
    %s111 = sphi 0, %s111
    %s113 = sphi 0, %s111
    %s114 = sphi 0, %s113
    %s128 = sphi 0, %s114
    %s132 = sphi 0, %s132
    %s134 = sphi 0, %s132
    %s135 = sphi 0, %s134
    %s149 = sphi 0, %s135
    %s155 = sphi 0, %s157
    %s158 = sphi 0, %s155
    %s159 = sphi 0, %s158
    %s175 = sphi 0, %s159
  $region4: #{_lambda_.1} parent=0 // loop_header_branch
    %17 = sbr.rel (%p15) target = $region8
  $region5: #{_lambda_.1} parent=0 // loop_body
    %s19 = ssub.s32 %s14, 1
    %s20 = ssub.s32 %s14, 2
    %s21 = sadd.s32 %s14, 1
    %s22 = ssub.s32 %s14, %s21
    %p23 = scmp.eq.s32.totalorder %s22, 0
    %s25 = sadd.s32 %s24, 1
    %s26 = scalar_select %p23, %s24, %s25
    %p29 = pneg %p23
    %p30 = scmp.eq.s32.totalorder %s14, 1
    %p31 = por %p29, %p30
    %p32 = scmp.ne.s32.totalorder %s24, %s27
    %p33 = scmp.eq.s32.totalorder %s14, 0
    %p34 = por %p32, %p33
    %p35 = scmp.ne.s32.totalorder %s24, %s27
    %p36 = scmp.eq.s32.totalorder %s19, 1
    %p37 = por %p35, %p36
    %p38 = scmp.ne.s32.totalorder %s27, %s28
    %p39 = scmp.eq.s32.totalorder %s19, 0
    %p40 = por %p38, %p39
    %p41 = scmp.ne.s32.totalorder %s27, %s28
    %p42 = scmp.eq.s32.totalorder %s20, 1
    %p43 = por %p41, %p42
    %p45 = scmp.ne.s32.totalorder %s28, %s44
    %p46 = scmp.eq.s32.totalorder %s20, 0
    %p47 = por %p45, %p46
    %s49 = sadd.s32 %s48, 1
    %p52 = scmp.eq.s32.totalorder %s14, 1
    %p53 = scmp.ne.s32.totalorder %s48, %s50
    %p54 = scmp.eq.s32.totalorder %s14, 0
    %p55 = por %p53, %p54
    %p56 = scmp.ne.s32.totalorder %s48, %s50
    %p57 = scmp.eq.s32.totalorder %s19, 1
    %p58 = por %p56, %p57
    %p59 = scmp.ne.s32.totalorder %s50, %s51
    %p60 = scmp.eq.s32.totalorder %s19, 0
    %p61 = por %p59, %p60
    %p62 = scmp.ne.s32.totalorder %s50, %s51
    %p63 = scmp.eq.s32.totalorder %s20, 1
    %p64 = por %p62, %p63
    %p66 = scmp.ne.s32.totalorder %s51, %s65
    %p67 = scmp.eq.s32.totalorder %s20, 0
    %p68 = por %p66, %p67
    %s70 = sadd.s32 %s69, 1
    %p73 = scmp.eq.s32.totalorder %s14, 1
    %p74 = scmp.ne.s32.totalorder %s69, %s71
    %p75 = scmp.eq.s32.totalorder %s14, 0
    %p76 = por %p74, %p75
    %p77 = scmp.ne.s32.totalorder %s69, %s71
    %p78 = scmp.eq.s32.totalorder %s19, 1
    %p79 = por %p77, %p78
    %p80 = scmp.ne.s32.totalorder %s71, %s72
    %p81 = scmp.eq.s32.totalorder %s19, 0
    %p82 = por %p80, %p81
    %p83 = scmp.ne.s32.totalorder %s71, %s72
    %p84 = scmp.eq.s32.totalorder %s20, 1
    %p85 = por %p83, %p84
    %p87 = scmp.ne.s32.totalorder %s72, %s86
    %p88 = scmp.eq.s32.totalorder %s20, 0
    %p89 = por %p87, %p88
    %s91 = sadd.s32 %s90, 1
    %p94 = scmp.eq.s32.totalorder %s14, 1
    %p95 = scmp.ne.s32.totalorder %s90, %s92
    %p96 = scmp.eq.s32.totalorder %s14, 0
    %p97 = por %p95, %p96
    %p98 = scmp.ne.s32.totalorder %s90, %s92
    %p99 = scmp.eq.s32.totalorder %s19, 1
    %p100 = por %p98, %p99
    %p101 = scmp.ne.s32.totalorder %s92, %s93
    %p102 = scmp.eq.s32.totalorder %s19, 0
    %p103 = por %p101, %p102
    %p104 = scmp.ne.s32.totalorder %s92, %s93
    %p105 = scmp.eq.s32.totalorder %s20, 1
    %p106 = por %p104, %p105
    %p108 = scmp.ne.s32.totalorder %s93, %s107
    %p109 = scmp.eq.s32.totalorder %s20, 0
    %p110 = por %p108, %p109
    %s112 = sadd.s32 %s111, 1
    %p115 = scmp.eq.s32.totalorder %s14, 1
    %p116 = scmp.ne.s32.totalorder %s111, %s113
    %p117 = scmp.eq.s32.totalorder %s14, 0
    %p118 = por %p116, %p117
    %p119 = scmp.ne.s32.totalorder %s111, %s113
    %p120 = scmp.eq.s32.totalorder %s19, 1
    %p121 = por %p119, %p120
    %p122 = scmp.ne.s32.totalorder %s113, %s114
    %p123 = scmp.eq.s32.totalorder %s19, 0
    %p124 = por %p122, %p123
    %p125 = scmp.ne.s32.totalorder %s113, %s114
    %p126 = scmp.eq.s32.totalorder %s20, 1
    %p127 = por %p125, %p126
    %p129 = scmp.ne.s32.totalorder %s114, %s128
    %p130 = scmp.eq.s32.totalorder %s20, 0
    %p131 = por %p129, %p130
    %s133 = sadd.s32 %s132, 1
    %p136 = scmp.eq.s32.totalorder %s14, 1
    %p137 = scmp.ne.s32.totalorder %s132, %s134
    %p138 = scmp.eq.s32.totalorder %s14, 0
    %p139 = por %p137, %p138
    %p140 = scmp.ne.s32.totalorder %s132, %s134
    %p141 = scmp.eq.s32.totalorder %s19, 1
    %p142 = por %p140, %p141
    %p143 = scmp.ne.s32.totalorder %s134, %s135
    %p144 = scmp.eq.s32.totalorder %s19, 0
    %p145 = por %p143, %p144
    %p146 = scmp.ne.s32.totalorder %s134, %s135
    %p147 = scmp.eq.s32.totalorder %s20, 1
    %p148 = por %p146, %p147
    %p150 = scmp.ne.s32.totalorder %s135, %s149
    %p151 = scmp.eq.s32.totalorder %s20, 0
    %p152 = por %p150, %p151
    %s153 = ssub.s32 %s14, %s21
    %p154 = scmp.eq.s32.totalorder %s153, 0
    %s156 = sadd.s32 %s155, 1
    %s157 = scalar_select %p154, %s155, %s156
    %p160 = pneg %p154
    %p161 = scmp.eq.s32.totalorder %s14, 1
    %p162 = por %p160, %p161
    %p163 = scmp.ne.s32.totalorder %s155, %s158
    %p164 = scmp.eq.s32.totalorder %s14, 0
    %p165 = por %p163, %p164
    %p166 = scmp.ne.s32.totalorder %s155, %s158
    %p167 = scmp.eq.s32.totalorder %s19, 1
    %p168 = por %p166, %p167
    %p169 = scmp.ne.s32.totalorder %s158, %s159
    %p170 = scmp.eq.s32.totalorder %s19, 0
    %p171 = por %p169, %p170
    %p172 = scmp.ne.s32.totalorder %s158, %s159
    %p173 = scmp.eq.s32.totalorder %s20, 1
    %p174 = por %p172, %p173
    %p176 = scmp.ne.s32.totalorder %s159, %s175
    %p177 = scmp.eq.s32.totalorder %s20, 0
    %p178 = por %p176, %p177
    %p179 = scmp.le.s32.totalorder 1, %s14
    %p180 = scmp.lt.s32.totalorder %s14, 3
    %p181 = pnand %p179, %p180
    %p182 = pneg %p181
    // Predicated region
    $region9: #{_lambda_.1} parent=5 // pred_check
      _
    $region10: #{_lambda_.1} parent=5 // pred_check_branch
      %184 = sbr.rel (%p181) target = $region12
    $region11: #{_lambda_.1} parent=5 // pred_region
      %s185 = ssub.s32 %s14, 1
      // Predicated region
      $region13: #{_lambda_.1} parent=11 // pred_check
        %p186 = pneg %p61
      $region14: #{_lambda_.1} parent=11 // pred_check_branch
        %188 = sbr.rel (%p186) target = $region16
      $region15: #{_lambda_.1} parent=11 // pred_region
        _
      $region16: #{_lambda_.1} parent=11 // pred_fallthru
        _
      // Predicated region
      $region17: #{_lambda_.1} parent=11 // pred_check
        %p189 = pneg %p82
      $region18: #{_lambda_.1} parent=11 // pred_check_branch
        %191 = sbr.rel (%p189) target = $region20
      $region19: #{_lambda_.1} parent=11 // pred_region
        _
      $region20: #{_lambda_.1} parent=11 // pred_fallthru
        _
      // Predicated region
      $region21: #{_lambda_.1} parent=11 // pred_check
        %p192 = pneg %p103
      $region22: #{_lambda_.1} parent=11 // pred_check_branch
        %194 = sbr.rel (%p192) target = $region24
      $region23: #{_lambda_.1} parent=11 // pred_region
        _
      $region24: #{_lambda_.1} parent=11 // pred_fallthru
        _
      // Predicated region
      $region25: #{_lambda_.1} parent=11 // pred_check
        %p195 = pneg %p124
      $region26: #{_lambda_.1} parent=11 // pred_check_branch
        %197 = sbr.rel (%p195) target = $region28
      $region27: #{_lambda_.1} parent=11 // pred_region
        _
      $region28: #{_lambda_.1} parent=11 // pred_fallthru
        _
      // Predicated region
      $region29: #{_lambda_.1} parent=11 // pred_check
        %p198 = pneg %p145
      $region30: #{_lambda_.1} parent=11 // pred_check_branch
        %200 = sbr.rel (%p198) target = $region32
      $region31: #{_lambda_.1} parent=11 // pred_region
        _
      $region32: #{_lambda_.1} parent=11 // pred_fallthru
        _
    $region12: #{_lambda_.1} parent=5 // pred_fallthru
      _
    %p201 = scmp.lt.s32.totalorder %s14, 2
    // Predicated region
    $region33: #{_lambda_.1} parent=5 // pred_check
      %p202 = pneg %p201
    $region34: #{_lambda_.1} parent=5 // pred_check_branch
      %204 = sbr.rel (%p202) target = $region36
    $region35: #{_lambda_.1} parent=5 // pred_region
      // Predicated region
      $region37: #{_lambda_.1} parent=35 // pred_check
        %p205 = pneg %p34
      $region38: #{_lambda_.1} parent=35 // pred_check_branch
        %207 = sbr.rel (%p205) target = $region40
      $region39: #{_lambda_.1} parent=35 // pred_region
        %p208 = scmp.lt.s32.totalorder %s14, 1
        %s209 = scalar_select %p208, %s14, 1
        %s210 = smul.addr %s209, 2
        %s211 = smul.addr %s210, 4
        %s212 = scalar_lea.vmem %s0, %s211
      $region40: #{_lambda_.1} parent=35 // pred_fallthru
        _
    $region36: #{_lambda_.1} parent=5 // pred_fallthru
      _
    %p213 = scmp.le.s32.totalorder 1, %s14
    %p214 = scmp.lt.s32.totalorder %s14, 3
    %p215 = pnand %p213, %p214
    %p216 = pneg %p215
    // Predicated region
    $region41: #{_lambda_.1} parent=5 // pred_check
      _
    $region42: #{_lambda_.1} parent=5 // pred_check_branch
      %218 = sbr.rel (%p215) target = $region44
    $region43: #{_lambda_.1} parent=5 // pred_region
      %s219 = ssub.s32 %s14, 1
      %p220 = scmp.lt.s32.totalorder %s19, 1
      %s221 = scalar_select %p220, %s19, 1
      %s222 = smul.addr %s221, 2
      %s223 = smul.addr %s222, 4
      %s224 = scalar_lea.vmem %s0, %s223
      %p225 = pneg %p40
      %p226 = pneg %p37
      %p227 = pneg %p61
      %p228 = pneg %p58
      %p229 = pneg %p82
      %p230 = pneg %p79
      %p231 = pneg %p103
      %p232 = pneg %p100
      %p233 = pneg %p124
      %p234 = pneg %p121
      %p235 = pneg %p145
      %p236 = pneg %p142
      %p237 = pneg %p171
      %p238 = pneg %p168
      %p239 = scmp.lt.s32.totalorder %s19, 1
      %s240 = scalar_select %p239, %s19, 1
      %s241 = scalar_lea.vmem %s6, %s240
      %p242 = scmp.lt.s32.totalorder %s19, 1
      %s243 = scalar_select %p242, %s19, 1
      %s244 = smul.addr %s243, 2
      %s245 = smul.addr %s244, 4
      %s246 = scalar_lea.vmem %s0, %s245
      %p247 = scmp.lt.s32.totalorder %s19, 1
      %s248 = scalar_select %p247, %s19, 1
      %s249 = scalar_lea.vmem %s6, %s248
      %v251 = vld [vmem:[%s1] sm:$0x1]
      %v252 = vld [vmem:[%s246] sm:$0xf]
      %v253 = vld [vmem:[%s2] sm:$0xf]
      %v254 = vld [vmem:[%s246] sm:$0xff]
      %s255 = scalar_lea.vmem %s2, 4
      %v256 = vld [vmem:[%s255] sm:$0xf]
      %v258 = vunpack.c.l.b16 %v254
      %v259 = vunpack.c.h.b16 %v254
      %v260 = vpack.c.b16 %v258, %v258
      %v261 = vpack.c.b16 %v259, %v259
      %262 = vrot.lane.b32.xlu0 %v260, 127
      %v263 = vpop.permute.xlu0 %262
      %264 = vrot.lane.b32.xlu0 %v261, 127
      %v265 = vpop.permute.xlu0 %264
      %vm266 = vcmask 1039360
      %v267 = vsel %vm266, %v263, %v265
      %vm268 = vcmask 64512
      %v270 = vsel %vm268, %v256, 0
      %vm272 = vcmask 1043456
      %v274 = vsel %vm272, %v267, 0
      %276 = vmatprep.subr.bf16.mxu0 0
      %277 = vmatpush1.bf16.msra.mxu0 %v274
      %278 = vmatprep.subr.bf16.mxu0 0
      %279 = vmatpush1.bf16.msra.mxu0 0
      %280 = vmatprep.subr.bf16.mxu0 0
      %281 = vmatpush1.bf16.msra.mxu0 0
      %282 = vmatprep.subr.bf16.mxu0 0
      %283 = vmatpush1.bf16.msra.mxu0 0
      %284 = vmatprep.subr.bf16.mxu0 0
      %285 = vmatpush1.bf16.msra.mxu0 0
      %286 = vmatprep.subr.bf16.mxu0 0
      %287 = vmatpush1.bf16.msra.mxu0 0
      %288 = vmatprep.subr.bf16.mxu0 0
      %289 = vmatpush1.bf16.msra.mxu0 0
      %290 = vmatprep.subr.bf16.mxu0 0
      %291 = vmatpush1.bf16.msra.mxu0 0
      %292 = vmatprep.subr.bf16.mxu0 0
      %293 = vmatpush1.bf16.msra.mxu0 0
      %294 = vmatprep.subr.bf16.mxu0 0
      %295 = vmatpush1.bf16.msra.mxu0 0
      %296 = vmatprep.subr.bf16.mxu0 0
      %297 = vmatpush1.bf16.msra.mxu0 0
      %298 = vmatprep.subr.bf16.mxu0 0
      %299 = vmatpush1.bf16.msra.mxu0 0
      %300 = vmatprep.subr.bf16.mxu0 0
      %301 = vmatpush1.bf16.msra.mxu0 0
      %302 = vmatprep.subr.bf16.mxu0 0
      %303 = vmatpush1.bf16.msra.mxu0 0
      %304 = vmatprep.subr.bf16.mxu0 0
      %305 = vmatpush1.bf16.msra.mxu0 0
      %306 = vmatprep.subr.bf16.mxu0 0
      %307 = vmatpush1.bf16.msra.mxu0 0
      %308 = vmatprep.mubr.bf16.mxu0 0
      %309 = vmatmul.mubr.bf16.gmra.mrb[0].mxu0 %v270
      %v310 = vpop.f32.mrb[0].mxu0
      %v311 = vadd.f32 0.0, %v310
      %v312 = vpop.f32.mrb[0].mxu0
      %v313 = vpop.f32.mrb[0].mxu0
      %v314 = vpop.f32.mrb[0].mxu0
      %315 = vdwg.mxu0
      %v317 = vsel %vm268, %v253, 0
      %v320 = vsel %vm272, %v252, 0
      %322 = vmatprep.subr.bf16.mxu0 0
      %323 = vmatpush1.bf16.msra.mxu0 %v320
      %324 = vmatprep.subr.bf16.mxu0 0
      %325 = vmatpush1.bf16.msra.mxu0 0
      %326 = vmatprep.subr.bf16.mxu0 0
      %327 = vmatpush1.bf16.msra.mxu0 0
      %328 = vmatprep.subr.bf16.mxu0 0
      %329 = vmatpush1.bf16.msra.mxu0 0
      %330 = vmatprep.subr.bf16.mxu0 0
      %331 = vmatpush1.bf16.msra.mxu0 0
      %332 = vmatprep.subr.bf16.mxu0 0
      %333 = vmatpush1.bf16.msra.mxu0 0
      %334 = vmatprep.subr.bf16.mxu0 0
      %335 = vmatpush1.bf16.msra.mxu0 0
      %336 = vmatprep.subr.bf16.mxu0 0
      %337 = vmatpush1.bf16.msra.mxu0 0
      %338 = vmatprep.subr.bf16.mxu0 0
      %339 = vmatpush1.bf16.msra.mxu0 0
      %340 = vmatprep.subr.bf16.mxu0 0
      %341 = vmatpush1.bf16.msra.mxu0 0
      %342 = vmatprep.subr.bf16.mxu0 0
      %343 = vmatpush1.bf16.msra.mxu0 0
      %344 = vmatprep.subr.bf16.mxu0 0
      %345 = vmatpush1.bf16.msra.mxu0 0
      %346 = vmatprep.subr.bf16.mxu0 0
      %347 = vmatpush1.bf16.msra.mxu0 0
      %348 = vmatprep.subr.bf16.mxu0 0
      %349 = vmatpush1.bf16.msra.mxu0 0
      %350 = vmatprep.subr.bf16.mxu0 0
      %351 = vmatpush1.bf16.msra.mxu0 0
      %352 = vmatprep.subr.bf16.mxu0 0
      %353 = vmatpush1.bf16.msra.mxu0 0
      %354 = vmatprep.mubr.bf16.mxu0 0
      %355 = vmatmul.mubr.bf16.gmra.mrb[0].mxu0 %v317
      %v356 = vpop.f32.mrb[0].mxu0
      %v357 = vadd.f32 %v311, %v356
      %v358 = vpop.f32.mrb[0].mxu0
      %v359 = vpop.f32.mrb[0].mxu0
      %v360 = vpop.f32.mrb[0].mxu0
      %361 = vdwg.mxu0
      %s362 = scalar_lea.vmem %s2, 8
      %v363 = vld [vmem:[%s362] sm:$0xf]
      %364 = vrot.lane.b32.xlu0 %v260, 126
      %v365 = vpop.permute.xlu0 %364
      %366 = vrot.lane.b32.xlu0 %v261, 126
      %v367 = vpop.permute.xlu0 %366
      %vm368 = vcmask 1031168
      %v369 = vsel %vm368, %v365, %v367
      %v371 = vsel %vm268, %v363, 0
      %v374 = vsel %vm272, %v369, 0
      %376 = vmatprep.subr.bf16.mxu0 0
      %377 = vmatpush1.bf16.msra.mxu0 %v374
      %378 = vmatprep.subr.bf16.mxu0 0
      %379 = vmatpush1.bf16.msra.mxu0 0
      %380 = vmatprep.subr.bf16.mxu0 0
      %381 = vmatpush1.bf16.msra.mxu0 0
      %382 = vmatprep.subr.bf16.mxu0 0
      %383 = vmatpush1.bf16.msra.mxu0 0
      %384 = vmatprep.subr.bf16.mxu0 0
      %385 = vmatpush1.bf16.msra.mxu0 0
      %386 = vmatprep.subr.bf16.mxu0 0
      %387 = vmatpush1.bf16.msra.mxu0 0
      %388 = vmatprep.subr.bf16.mxu0 0
      %389 = vmatpush1.bf16.msra.mxu0 0
      %390 = vmatprep.subr.bf16.mxu0 0
      %391 = vmatpush1.bf16.msra.mxu0 0
      %392 = vmatprep.subr.bf16.mxu0 0
      %393 = vmatpush1.bf16.msra.mxu0 0
      %394 = vmatprep.subr.bf16.mxu0 0
      %395 = vmatpush1.bf16.msra.mxu0 0
      %396 = vmatprep.subr.bf16.mxu0 0
      %397 = vmatpush1.bf16.msra.mxu0 0
      %398 = vmatprep.subr.bf16.mxu0 0
      %399 = vmatpush1.bf16.msra.mxu0 0
      %400 = vmatprep.subr.bf16.mxu0 0
      %401 = vmatpush1.bf16.msra.mxu0 0
      %402 = vmatprep.subr.bf16.mxu0 0
      %403 = vmatpush1.bf16.msra.mxu0 0
      %404 = vmatprep.subr.bf16.mxu0 0
      %405 = vmatpush1.bf16.msra.mxu0 0
      %406 = vmatprep.subr.bf16.mxu0 0
      %407 = vmatpush1.bf16.msra.mxu0 0
      %408 = vmatprep.mubr.bf16.mxu0 0
      %409 = vmatmul.mubr.bf16.gmra.mrb[0].mxu0 %v371
      %v410 = vpop.f32.mrb[0].mxu0
      %v411 = vadd.f32 0.0, %v410
      %v412 = vpop.f32.mrb[0].mxu0
      %v413 = vpop.f32.mrb[0].mxu0
      %v414 = vpop.f32.mrb[0].mxu0
      %415 = vdwg.mxu0
      %v416 = vadd.f32 %v357, %v411
      %s417 = scalar_lea.vmem %s2, 12
      %v418 = vld [vmem:[%s417] sm:$0xf]
      %419 = vrot.lane.b32.xlu0 %v260, 118
      %v420 = vpop.permute.xlu0 %419
      %421 = vrot.lane.b32.xlu0 %v261, 118
      %v422 = vpop.permute.xlu0 %421
      %vm423 = vcmask 965632
      %v424 = vsel %vm423, %v420, %v422
      %v426 = vsel %vm268, %v418, 0
      %v429 = vsel %vm272, %v424, 0
      %431 = vmatprep.subr.bf16.mxu0 0
      %432 = vmatpush1.bf16.msra.mxu0 %v429
      %433 = vmatprep.subr.bf16.mxu0 0
      %434 = vmatpush1.bf16.msra.mxu0 0
      %435 = vmatprep.subr.bf16.mxu0 0
      %436 = vmatpush1.bf16.msra.mxu0 0
      %437 = vmatprep.subr.bf16.mxu0 0
      %438 = vmatpush1.bf16.msra.mxu0 0
      %439 = vmatprep.subr.bf16.mxu0 0
      %440 = vmatpush1.bf16.msra.mxu0 0
      %441 = vmatprep.subr.bf16.mxu0 0
      %442 = vmatpush1.bf16.msra.mxu0 0
      %443 = vmatprep.subr.bf16.mxu0 0
      %444 = vmatpush1.bf16.msra.mxu0 0
      %445 = vmatprep.subr.bf16.mxu0 0
      %446 = vmatpush1.bf16.msra.mxu0 0
      %447 = vmatprep.subr.bf16.mxu0 0
      %448 = vmatpush1.bf16.msra.mxu0 0
      %449 = vmatprep.subr.bf16.mxu0 0
      %450 = vmatpush1.bf16.msra.mxu0 0
      %451 = vmatprep.subr.bf16.mxu0 0
      %452 = vmatpush1.bf16.msra.mxu0 0
      %453 = vmatprep.subr.bf16.mxu0 0
      %454 = vmatpush1.bf16.msra.mxu0 0
      %455 = vmatprep.subr.bf16.mxu0 0
      %456 = vmatpush1.bf16.msra.mxu0 0
      %457 = vmatprep.subr.bf16.mxu0 0
      %458 = vmatpush1.bf16.msra.mxu0 0
      %459 = vmatprep.subr.bf16.mxu0 0
      %460 = vmatpush1.bf16.msra.mxu0 0
      %461 = vmatprep.subr.bf16.mxu0 0
      %462 = vmatpush1.bf16.msra.mxu0 0
      %463 = vmatprep.mubr.bf16.mxu0 0
      %464 = vmatmul.mubr.bf16.gmra.mrb[0].mxu0 %v426
      %v465 = vpop.f32.mrb[0].mxu0
      %v466 = vadd.f32 0.0, %v465
      %v467 = vpop.f32.mrb[0].mxu0
      %v468 = vpop.f32.mrb[0].mxu0
      %v469 = vpop.f32.mrb[0].mxu0
      %470 = vdwg.mxu0
      %v471 = vadd.f32 %v416, %v466
      %s472 = scalar_lea.vmem %s2, 16
      %v473 = vld [vmem:[%s472] sm:$0xf]
      %474 = vrot.lane.b32.xlu0 %v260, 117
      %v475 = vpop.permute.xlu0 %474
      %476 = vrot.lane.b32.xlu0 %v261, 117
      %v477 = vpop.permute.xlu0 %476
      %vm478 = vcmask 957440
      %v479 = vsel %vm478, %v475, %v477
      %v481 = vsel %vm268, %v473, 0
      %v484 = vsel %vm272, %v479, 0
      %486 = vmatprep.subr.bf16.mxu0 0
      %487 = vmatpush1.bf16.msra.mxu0 %v484
      %488 = vmatprep.subr.bf16.mxu0 0
      %489 = vmatpush1.bf16.msra.mxu0 0
      %490 = vmatprep.subr.bf16.mxu0 0
      %491 = vmatpush1.bf16.msra.mxu0 0
      %492 = vmatprep.subr.bf16.mxu0 0
      %493 = vmatpush1.bf16.msra.mxu0 0
      %494 = vmatprep.subr.bf16.mxu0 0
      %495 = vmatpush1.bf16.msra.mxu0 0
      %496 = vmatprep.subr.bf16.mxu0 0
      %497 = vmatpush1.bf16.msra.mxu0 0
      %498 = vmatprep.subr.bf16.mxu0 0
      %499 = vmatpush1.bf16.msra.mxu0 0
      %500 = vmatprep.subr.bf16.mxu0 0
      %501 = vmatpush1.bf16.msra.mxu0 0
      %502 = vmatprep.subr.bf16.mxu0 0
      %503 = vmatpush1.bf16.msra.mxu0 0
      %504 = vmatprep.subr.bf16.mxu0 0
      %505 = vmatpush1.bf16.msra.mxu0 0
      %506 = vmatprep.subr.bf16.mxu0 0
      %507 = vmatpush1.bf16.msra.mxu0 0
      %508 = vmatprep.subr.bf16.mxu0 0
      %509 = vmatpush1.bf16.msra.mxu0 0
      %510 = vmatprep.subr.bf16.mxu0 0
      %511 = vmatpush1.bf16.msra.mxu0 0
      %512 = vmatprep.subr.bf16.mxu0 0
      %513 = vmatpush1.bf16.msra.mxu0 0
      %514 = vmatprep.subr.bf16.mxu0 0
      %515 = vmatpush1.bf16.msra.mxu0 0
      %516 = vmatprep.subr.bf16.mxu0 0
      %517 = vmatpush1.bf16.msra.mxu0 0
      %518 = vmatprep.mubr.bf16.mxu0 0
      %519 = vmatmul.mubr.bf16.gmra.mrb[0].mxu0 %v481
      %v520 = vpop.f32.mrb[0].mxu0
      %v521 = vadd.f32 0.0, %v520
      %v522 = vpop.f32.mrb[0].mxu0
      %v523 = vpop.f32.mrb[0].mxu0
      %v524 = vpop.f32.mrb[0].mxu0
      %525 = vdwg.mxu0
      %v526 = vadd.f32 %v471, %v521
      %s527 = scalar_lea.vmem %s2, 20
      %v528 = vld [vmem:[%s527] sm:$0xf]
      %529 = vrot.lane.b32.xlu0 %v260, 116
      %v530 = vpop.permute.xlu0 %529
      %531 = vrot.lane.b32.xlu0 %v261, 116
      %v532 = vpop.permute.xlu0 %531
      %vm533 = vcmask 949248
      %v534 = vsel %vm533, %v530, %v532
      %v536 = vsel %vm268, %v528, 0
      %v539 = vsel %vm272, %v534, 0
      %541 = vmatprep.subr.bf16.mxu0 0
      %542 = vmatpush1.bf16.msra.mxu0 %v539
      %543 = vmatprep.subr.bf16.mxu0 0
      %544 = vmatpush1.bf16.msra.mxu0 0
      %545 = vmatprep.subr.bf16.mxu0 0
      %546 = vmatpush1.bf16.msra.mxu0 0
      %547 = vmatprep.subr.bf16.mxu0 0
      %548 = vmatpush1.bf16.msra.mxu0 0
      %549 = vmatprep.subr.bf16.mxu0 0
      %550 = vmatpush1.bf16.msra.mxu0 0
      %551 = vmatprep.subr.bf16.mxu0 0
      %552 = vmatpush1.bf16.msra.mxu0 0
      %553 = vmatprep.subr.bf16.mxu0 0
      %554 = vmatpush1.bf16.msra.mxu0 0
      %555 = vmatprep.subr.bf16.mxu0 0
      %556 = vmatpush1.bf16.msra.mxu0 0
      %557 = vmatprep.subr.bf16.mxu0 0
      %558 = vmatpush1.bf16.msra.mxu0 0
      %559 = vmatprep.subr.bf16.mxu0 0
      %560 = vmatpush1.bf16.msra.mxu0 0
      %561 = vmatprep.subr.bf16.mxu0 0
      %562 = vmatpush1.bf16.msra.mxu0 0
      %563 = vmatprep.subr.bf16.mxu0 0
      %564 = vmatpush1.bf16.msra.mxu0 0
      %565 = vmatprep.subr.bf16.mxu0 0
      %566 = vmatpush1.bf16.msra.mxu0 0
      %567 = vmatprep.subr.bf16.mxu0 0
      %568 = vmatpush1.bf16.msra.mxu0 0
      %569 = vmatprep.subr.bf16.mxu0 0
      %570 = vmatpush1.bf16.msra.mxu0 0
      %571 = vmatprep.subr.bf16.mxu0 0
      %572 = vmatpush1.bf16.msra.mxu0 0
      %573 = vmatprep.mubr.bf16.mxu0 0
      %574 = vmatmul.mubr.bf16.gmra.mrb[0].mxu0 %v536
      %v575 = vpop.f32.mrb[0].mxu0
      %v576 = vadd.f32 0.0, %v575
      %v577 = vpop.f32.mrb[0].mxu0
      %v578 = vpop.f32.mrb[0].mxu0
      %v579 = vpop.f32.mrb[0].mxu0
      %580 = vdwg.mxu0
      %v581 = vadd.f32 %v526, %v576
      %s582 = scalar_lea.vmem %s2, 24
      %v583 = vld [vmem:[%s582] sm:$0xf]
      %584 = vrot.lane.b32.xlu0 %v260, 108
      %v585 = vpop.permute.xlu0 %584
      %586 = vrot.lane.b32.xlu0 %v261, 108
      %v587 = vpop.permute.xlu0 %586
      %vm588 = vcmask 883712
      %v589 = vsel %vm588, %v585, %v587
      %v591 = vsel %vm268, %v583, 0
      %v594 = vsel %vm272, %v589, 0
      %596 = vmatprep.subr.bf16.mxu0 0
      %597 = vmatpush1.bf16.msra.mxu0 %v594
      %598 = vmatprep.subr.bf16.mxu0 0
      %599 = vmatpush1.bf16.msra.mxu0 0
      %600 = vmatprep.subr.bf16.mxu0 0
      %601 = vmatpush1.bf16.msra.mxu0 0
      %602 = vmatprep.subr.bf16.mxu0 0
      %603 = vmatpush1.bf16.msra.mxu0 0
      %604 = vmatprep.subr.bf16.mxu0 0
      %605 = vmatpush1.bf16.msra.mxu0 0
      %606 = vmatprep.subr.bf16.mxu0 0
      %607 = vmatpush1.bf16.msra.mxu0 0
      %608 = vmatprep.subr.bf16.mxu0 0
      %609 = vmatpush1.bf16.msra.mxu0 0
      %610 = vmatprep.subr.bf16.mxu0 0
      %611 = vmatpush1.bf16.msra.mxu0 0
      %612 = vmatprep.subr.bf16.mxu0 0
      %613 = vmatpush1.bf16.msra.mxu0 0
      %614 = vmatprep.subr.bf16.mxu0 0
      %615 = vmatpush1.bf16.msra.mxu0 0
      %616 = vmatprep.subr.bf16.mxu0 0
      %617 = vmatpush1.bf16.msra.mxu0 0
      %618 = vmatprep.subr.bf16.mxu0 0
      %619 = vmatpush1.bf16.msra.mxu0 0
      %620 = vmatprep.subr.bf16.mxu0 0
      %621 = vmatpush1.bf16.msra.mxu0 0
      %622 = vmatprep.subr.bf16.mxu0 0
      %623 = vmatpush1.bf16.msra.mxu0 0
      %624 = vmatprep.subr.bf16.mxu0 0
      %625 = vmatpush1.bf16.msra.mxu0 0
      %626 = vmatprep.subr.bf16.mxu0 0
      %627 = vmatpush1.bf16.msra.mxu0 0
      %628 = vmatprep.mubr.bf16.mxu0 0
      %629 = vmatmul.mubr.bf16.gmra.mrb[0].mxu0 %v591
      %v630 = vpop.f32.mrb[0].mxu0
      %v631 = vadd.f32 0.0, %v630
      %v632 = vpop.f32.mrb[0].mxu0
      %v633 = vpop.f32.mrb[0].mxu0
      %v634 = vpop.f32.mrb[0].mxu0
      %635 = vdwg.mxu0
      %v636 = vadd.f32 %v581, %v631
      %s637 = scalar_lea.vmem %s2, 28
      %v638 = vld [vmem:[%s637] sm:$0xf]
      %639 = vrot.lane.b32.xlu0 %v260, 107
      %v640 = vpop.permute.xlu0 %639
      %641 = vrot.lane.b32.xlu0 %v261, 107
      %v642 = vpop.permute.xlu0 %641
      %vm643 = vcmask 875520
      %v644 = vsel %vm643, %v640, %v642
      %v646 = vsel %vm268, %v638, 0
      %v649 = vsel %vm272, %v644, 0
      %651 = vmatprep.subr.bf16.mxu0 0
      %652 = vmatpush1.bf16.msra.mxu0 %v649
      %653 = vmatprep.subr.bf16.mxu0 0
      %654 = vmatpush1.bf16.msra.mxu0 0
      %655 = vmatprep.subr.bf16.mxu0 0
      %656 = vmatpush1.bf16.msra.mxu0 0
      %657 = vmatprep.subr.bf16.mxu0 0
      %658 = vmatpush1.bf16.msra.mxu0 0
      %659 = vmatprep.subr.bf16.mxu0 0
      %660 = vmatpush1.bf16.msra.mxu0 0
      %661 = vmatprep.subr.bf16.mxu0 0
      %662 = vmatpush1.bf16.msra.mxu0 0
      %663 = vmatprep.subr.bf16.mxu0 0
      %664 = vmatpush1.bf16.msra.mxu0 0
      %665 = vmatprep.subr.bf16.mxu0 0
      %666 = vmatpush1.bf16.msra.mxu0 0
      %667 = vmatprep.subr.bf16.mxu0 0
      %668 = vmatpush1.bf16.msra.mxu0 0
      %669 = vmatprep.subr.bf16.mxu0 0
      %670 = vmatpush1.bf16.msra.mxu0 0
      %671 = vmatprep.subr.bf16.mxu0 0
      %672 = vmatpush1.bf16.msra.mxu0 0
      %673 = vmatprep.subr.bf16.mxu0 0
      %674 = vmatpush1.bf16.msra.mxu0 0
      %675 = vmatprep.subr.bf16.mxu0 0
      %676 = vmatpush1.bf16.msra.mxu0 0
      %677 = vmatprep.subr.bf16.mxu0 0
      %678 = vmatpush1.bf16.msra.mxu0 0
      %679 = vmatprep.subr.bf16.mxu0 0
      %680 = vmatpush1.bf16.msra.mxu0 0
      %681 = vmatprep.subr.bf16.mxu0 0
      %682 = vmatpush1.bf16.msra.mxu0 0
      %683 = vmatprep.mubr.bf16.mxu0 0
      %684 = vmatmul.mubr.bf16.gmra.mrb[0].mxu0 %v646
      %v685 = vpop.f32.mrb[0].mxu0
      %v686 = vadd.f32 0.0, %v685
      %v687 = vpop.f32.mrb[0].mxu0
      %v688 = vpop.f32.mrb[0].mxu0
      %v689 = vpop.f32.mrb[0].mxu0
      %690 = vdwg.mxu0
      %v691 = vadd.f32 %v636, %v686
      %s692 = scalar_lea.vmem %s2, 32
      %v693 = vld [vmem:[%s692] sm:$0xf]
      %694 = vrot.lane.b32.xlu0 %v260, 106
      %v695 = vpop.permute.xlu0 %694
      %696 = vrot.lane.b32.xlu0 %v261, 106
      %v697 = vpop.permute.xlu0 %696
      %vm698 = vcmask 867328
      %v699 = vsel %vm698, %v695, %v697
      %v701 = vsel %vm268, %v693, 0
      %v704 = vsel %vm272, %v699, 0
      %706 = vmatprep.subr.bf16.mxu0 0
      %707 = vmatpush1.bf16.msra.mxu0 %v704
      %708 = vmatprep.subr.bf16.mxu0 0
      %709 = vmatpush1.bf16.msra.mxu0 0
      %710 = vmatprep.subr.bf16.mxu0 0
      %711 = vmatpush1.bf16.msra.mxu0 0
      %712 = vmatprep.subr.bf16.mxu0 0
      %713 = vmatpush1.bf16.msra.mxu0 0
      %714 = vmatprep.subr.bf16.mxu0 0
      %715 = vmatpush1.bf16.msra.mxu0 0
      %716 = vmatprep.subr.bf16.mxu0 0
      %717 = vmatpush1.bf16.msra.mxu0 0
      %718 = vmatprep.subr.bf16.mxu0 0
      %719 = vmatpush1.bf16.msra.mxu0 0
      %720 = vmatprep.subr.bf16.mxu0 0
      %721 = vmatpush1.bf16.msra.mxu0 0
      %722 = vmatprep.subr.bf16.mxu0 0
      %723 = vmatpush1.bf16.msra.mxu0 0
      %724 = vmatprep.subr.bf16.mxu0 0
      %725 = vmatpush1.bf16.msra.mxu0 0
      %726 = vmatprep.subr.bf16.mxu0 0
      %727 = vmatpush1.bf16.msra.mxu0 0
      %728 = vmatprep.subr.bf16.mxu0 0
      %729 = vmatpush1.bf16.msra.mxu0 0
      %730 = vmatprep.subr.bf16.mxu0 0
      %731 = vmatpush1.bf16.msra.mxu0 0
      %732 = vmatprep.subr.bf16.mxu0 0
      %733 = vmatpush1.bf16.msra.mxu0 0
      %734 = vmatprep.subr.bf16.mxu0 0
      %735 = vmatpush1.bf16.msra.mxu0 0
      %736 = vmatprep.subr.bf16.mxu0 0
      %737 = vmatpush1.bf16.msra.mxu0 0
      %738 = vmatprep.mubr.bf16.mxu0 0
      %739 = vmatmul.mubr.bf16.gmra.mrb[0].mxu0 %v701
      %v740 = vpop.f32.mrb[0].mxu0
      %v741 = vadd.f32 0.0, %v740
      %v742 = vpop.f32.mrb[0].mxu0
      %v743 = vpop.f32.mrb[0].mxu0
      %v744 = vpop.f32.mrb[0].mxu0
      %745 = vdwg.mxu0
      %v746 = vadd.f32 %v691, %v741
      %v747 = vld [vmem:[%s3] sm:$0xff]
      %749 = vset.pattern.permute.xlu0 0
      %750 = vperm.xlu0 %749, %v747
      %v751 = vpop.permute.xlu0 %750
      %v753 = vadd.f32 %v746, %v751
      %v754 = vmax.f32 %v753, 0.0
      %v756 = vlaneseq
      %v757 = vshrl.u32 %v756, 7
      %v758 = vsub.s32 0, %v757
      %v759 = vrot.slane %v251, %v758
      %v761 = vmul.f32 %v754, %v759
      %762 = vst [vmem:[#allocation2] sm:$0xff] 0
      %v763 = vpack.c.bf16 %v761, %v761
      %764 = vst [vmem:[#allocation2] sm:$0xf] %v763
      %v765 = vld [vmem:[#allocation2] sm:$0xf]
      %v766 = vld [vmem:[%s4] sm:$0x1]
      %v767 = vld [vmem:[#allocation2] sm:$0xff]
      %s768 = scalar_lea.vmem %s4, 1
      %v769 = vld [vmem:[%s768] sm:$0x1]
      %v771 = vunpack.c.l.b16 %v767
      %v772 = vunpack.c.h.b16 %v767
      %v773 = vpack.c.b16 %v771, %v771
      %v774 = vpack.c.b16 %v772, %v772
      %775 = vrot.lane.b32.xlu0 %v773, 127
      %v776 = vpop.permute.xlu0 %775
      %777 = vrot.lane.b32.xlu0 %v774, 127
      %v778 = vpop.permute.xlu0 %777
      %v779 = vsel %vm266, %v776, %v778
      %v781 = vsel %vm268, %v769, 0
      %v784 = vsel %vm272, %v779, 0
      %786 = vmatprep.subr.bf16.mxu0 0
      %787 = vmatpush1.bf16.msra.mxu0 %v784
      %788 = vmatprep.subr.bf16.mxu0 0
      %789 = vmatpush1.bf16.msra.mxu0 0
      %790 = vmatprep.subr.bf16.mxu0 0
      %791 = vmatpush1.bf16.msra.mxu0 0
      %792 = vmatprep.subr.bf16.mxu0 0
      %793 = vmatpush1.bf16.msra.mxu0 0
      %794 = vmatprep.subr.bf16.mxu0 0
      %795 = vmatpush1.bf16.msra.mxu0 0
      %796 = vmatprep.subr.bf16.mxu0 0
      %797 = vmatpush1.bf16.msra.mxu0 0
      %798 = vmatprep.subr.bf16.mxu0 0
      %799 = vmatpush1.bf16.msra.mxu0 0
      %800 = vmatprep.subr.bf16.mxu0 0
      %801 = vmatpush1.bf16.msra.mxu0 0
      %802 = vmatprep.subr.bf16.mxu0 0
      %803 = vmatpush1.bf16.msra.mxu0 0
      %804 = vmatprep.subr.bf16.mxu0 0
      %805 = vmatpush1.bf16.msra.mxu0 0
      %806 = vmatprep.subr.bf16.mxu0 0
      %807 = vmatpush1.bf16.msra.mxu0 0
      %808 = vmatprep.subr.bf16.mxu0 0
      %809 = vmatpush1.bf16.msra.mxu0 0
      %810 = vmatprep.subr.bf16.mxu0 0
      %811 = vmatpush1.bf16.msra.mxu0 0
      %812 = vmatprep.subr.bf16.mxu0 0
      %813 = vmatpush1.bf16.msra.mxu0 0
      %814 = vmatprep.subr.bf16.mxu0 0
      %815 = vmatpush1.bf16.msra.mxu0 0
      %816 = vmatprep.subr.bf16.mxu0 0
      %817 = vmatpush1.bf16.msra.mxu0 0
      %818 = vmatprep.mubr.bf16.mxu0 0
      %819 = vmatmul.mubr.bf16.gmra.mrb[0].mxu0 %v781
      %v820 = vpop.f32.mrb[0].mxu0
      %v821 = vadd.f32 0.0, %v820
      %v822 = vpop.f32.mrb[0].mxu0
      %v823 = vpop.f32.mrb[0].mxu0
      %v824 = vpop.f32.mrb[0].mxu0
      %825 = vdwg.mxu0
      %v827 = vsel %vm268, %v766, 0
      %v830 = vsel %vm272, %v765, 0
      %832 = vmatprep.subr.bf16.mxu0 0
      %833 = vmatpush1.bf16.msra.mxu0 %v830
      %834 = vmatprep.subr.bf16.mxu0 0
      %835 = vmatpush1.bf16.msra.mxu0 0
      %836 = vmatprep.subr.bf16.mxu0 0
      %837 = vmatpush1.bf16.msra.mxu0 0
      %838 = vmatprep.subr.bf16.mxu0 0
      %839 = vmatpush1.bf16.msra.mxu0 0
      %840 = vmatprep.subr.bf16.mxu0 0
      %841 = vmatpush1.bf16.msra.mxu0 0
      %842 = vmatprep.subr.bf16.mxu0 0
      %843 = vmatpush1.bf16.msra.mxu0 0
      %844 = vmatprep.subr.bf16.mxu0 0
      %845 = vmatpush1.bf16.msra.mxu0 0
      %846 = vmatprep.subr.bf16.mxu0 0
      %847 = vmatpush1.bf16.msra.mxu0 0
      %848 = vmatprep.subr.bf16.mxu0 0
      %849 = vmatpush1.bf16.msra.mxu0 0
      %850 = vmatprep.subr.bf16.mxu0 0
      %851 = vmatpush1.bf16.msra.mxu0 0
      %852 = vmatprep.subr.bf16.mxu0 0
      %853 = vmatpush1.bf16.msra.mxu0 0
      %854 = vmatprep.subr.bf16.mxu0 0
      %855 = vmatpush1.bf16.msra.mxu0 0
      %856 = vmatprep.subr.bf16.mxu0 0
      %857 = vmatpush1.bf16.msra.mxu0 0
      %858 = vmatprep.subr.bf16.mxu0 0
      %859 = vmatpush1.bf16.msra.mxu0 0
      %860 = vmatprep.subr.bf16.mxu0 0
      %861 = vmatpush1.bf16.msra.mxu0 0
      %862 = vmatprep.subr.bf16.mxu0 0
      %863 = vmatpush1.bf16.msra.mxu0 0
      %864 = vmatprep.mubr.bf16.mxu0 0
      %865 = vmatmul.mubr.bf16.gmra.mrb[0].mxu0 %v827
      %v866 = vpop.f32.mrb[0].mxu0
      %v867 = vadd.f32 %v821, %v866
      %v868 = vpop.f32.mrb[0].mxu0
      %v869 = vpop.f32.mrb[0].mxu0
      %v870 = vpop.f32.mrb[0].mxu0
      %871 = vdwg.mxu0
      %s872 = scalar_lea.vmem %s4, 2
      %v873 = vld [vmem:[%s872] sm:$0x1]
      %874 = vrot.lane.b32.xlu0 %v773, 118
      %v875 = vpop.permute.xlu0 %874
      %876 = vrot.lane.b32.xlu0 %v774, 118
      %v877 = vpop.permute.xlu0 %876
      %v878 = vsel %vm423, %v875, %v877
      %v880 = vsel %vm268, %v873, 0
      %v883 = vsel %vm272, %v878, 0
      %885 = vmatprep.subr.bf16.mxu0 0
      %886 = vmatpush1.bf16.msra.mxu0 %v883
      %887 = vmatprep.subr.bf16.mxu0 0
      %888 = vmatpush1.bf16.msra.mxu0 0
      %889 = vmatprep.subr.bf16.mxu0 0
      %890 = vmatpush1.bf16.msra.mxu0 0
      %891 = vmatprep.subr.bf16.mxu0 0
      %892 = vmatpush1.bf16.msra.mxu0 0
      %893 = vmatprep.subr.bf16.mxu0 0
      %894 = vmatpush1.bf16.msra.mxu0 0
      %895 = vmatprep.subr.bf16.mxu0 0
      %896 = vmatpush1.bf16.msra.mxu0 0
      %897 = vmatprep.subr.bf16.mxu0 0
      %898 = vmatpush1.bf16.msra.mxu0 0
      %899 = vmatprep.subr.bf16.mxu0 0
      %900 = vmatpush1.bf16.msra.mxu0 0
      %901 = vmatprep.subr.bf16.mxu0 0
      %902 = vmatpush1.bf16.msra.mxu0 0
      %903 = vmatprep.subr.bf16.mxu0 0
      %904 = vmatpush1.bf16.msra.mxu0 0
      %905 = vmatprep.subr.bf16.mxu0 0
      %906 = vmatpush1.bf16.msra.mxu0 0
      %907 = vmatprep.subr.bf16.mxu0 0
      %908 = vmatpush1.bf16.msra.mxu0 0
      %909 = vmatprep.subr.bf16.mxu0 0
      %910 = vmatpush1.bf16.msra.mxu0 0
      %911 = vmatprep.subr.bf16.mxu0 0
      %912 = vmatpush1.bf16.msra.mxu0 0
      %913 = vmatprep.subr.bf16.mxu0 0
      %914 = vmatpush1.bf16.msra.mxu0 0
      %915 = vmatprep.subr.bf16.mxu0 0
      %916 = vmatpush1.bf16.msra.mxu0 0
      %917 = vmatprep.mubr.bf16.mxu0 0
      %918 = vmatmul.mubr.bf16.gmra.mrb[0].mxu0 %v880
      %v919 = vpop.f32.mrb[0].mxu0
      %v920 = vadd.f32 0.0, %v919
      %v921 = vpop.f32.mrb[0].mxu0
      %v922 = vpop.f32.mrb[0].mxu0
      %v923 = vpop.f32.mrb[0].mxu0
      %924 = vdwg.mxu0
      %v925 = vadd.f32 %v867, %v920
      %s926 = scalar_lea.vmem %s4, 3
      %v927 = vld [vmem:[%s926] sm:$0x1]
      %928 = vrot.lane.b32.xlu0 %v773, 117
      %v929 = vpop.permute.xlu0 %928
      %930 = vrot.lane.b32.xlu0 %v774, 117
      %v931 = vpop.permute.xlu0 %930
      %v932 = vsel %vm478, %v929, %v931
      %v934 = vsel %vm268, %v927, 0
      %v937 = vsel %vm272, %v932, 0
      %939 = vmatprep.subr.bf16.mxu0 0
      %940 = vmatpush1.bf16.msra.mxu0 %v937
      %941 = vmatprep.subr.bf16.mxu0 0
      %942 = vmatpush1.bf16.msra.mxu0 0
      %943 = vmatprep.subr.bf16.mxu0 0
      %944 = vmatpush1.bf16.msra.mxu0 0
      %945 = vmatprep.subr.bf16.mxu0 0
      %946 = vmatpush1.bf16.msra.mxu0 0
      %947 = vmatprep.subr.bf16.mxu0 0
      %948 = vmatpush1.bf16.msra.mxu0 0
      %949 = vmatprep.subr.bf16.mxu0 0
      %950 = vmatpush1.bf16.msra.mxu0 0
      %951 = vmatprep.subr.bf16.mxu0 0
      %952 = vmatpush1.bf16.msra.mxu0 0
      %953 = vmatprep.subr.bf16.mxu0 0
      %954 = vmatpush1.bf16.msra.mxu0 0
      %955 = vmatprep.subr.bf16.mxu0 0
      %956 = vmatpush1.bf16.msra.mxu0 0
      %957 = vmatprep.subr.bf16.mxu0 0
      %958 = vmatpush1.bf16.msra.mxu0 0
      %959 = vmatprep.subr.bf16.mxu0 0
      %960 = vmatpush1.bf16.msra.mxu0 0
      %961 = vmatprep.subr.bf16.mxu0 0
      %962 = vmatpush1.bf16.msra.mxu0 0
      %963 = vmatprep.subr.bf16.mxu0 0
      %964 = vmatpush1.bf16.msra.mxu0 0
      %965 = vmatprep.subr.bf16.mxu0 0
      %966 = vmatpush1.bf16.msra.mxu0 0
      %967 = vmatprep.subr.bf16.mxu0 0
      %968 = vmatpush1.bf16.msra.mxu0 0
      %969 = vmatprep.subr.bf16.mxu0 0
      %970 = vmatpush1.bf16.msra.mxu0 0
      %971 = vmatprep.mubr.bf16.mxu0 0
      %972 = vmatmul.mubr.bf16.gmra.mrb[0].mxu0 %v934
      %v973 = vpop.f32.mrb[0].mxu0
      %v974 = vadd.f32 0.0, %v973
      %v975 = vpop.f32.mrb[0].mxu0
      %v976 = vpop.f32.mrb[0].mxu0
      %v977 = vpop.f32.mrb[0].mxu0
      %978 = vdwg.mxu0
      %v979 = vadd.f32 %v925, %v974
      %v980 = vld [vmem:[#allocation3] sm:$0x1]
      %982 = vset.pattern.permute.xlu0 0
      %983 = vperm.xlu0 %982, %v980
      %v984 = vpop.permute.xlu0 %983
      %v986 = vlaneseq
      %v987 = vshrl.u32 %v986, 7
      %v988 = vsub.s32 0, %v987
      %v989 = vrot.slane %v984, %v988
      %v990 = vadd.f32 %v979, %v989
      %vm991 = vcmp.gt.f32.partialorder %v251, 0.5
      %v992 = vsel %vm991, %v990, -1e+30
      %vm993 = vcmask 1040384
      %v994 = vsel %vm993, %v992, -inf
      %995 = vmax.xlane.f32.xlu0 %v994
      %v996 = vpop.xlane.xlu0 %995
      %v997 = vsub.f32 %v992, %v996
      %v998 = vmul.f32 %v997, 1.442695
      %v999 = vpow.pop %v998
      %v1000 = vmul.f32 %v999, %v251
      %v1001 = vsel %vm993, %v1000, 0.0
      %1002 = vadd.xlane.f32.xlu0 %v1001
      %v1003 = vpop.xlane.xlu0 %1002
      %v1004 = vrcp.pop %v1003
      %v1005 = vmul.f32 %v1003, %v1004
      %v1006 = vsub.f32 2.0, %v1005
      %v1007 = vmul.f32 %v1004, %v1006
      %v1008 = vmul.f32 %v1000, %v1007
      %1009 = vst [vmem:[%s249] sm:$0x1] %v1008
      %p1010 = scmp.lt.s32.totalorder %s19, 1
      %s1011 = scalar_select %p1010, %s19, 1
      %s1012 = scalar_lea.vmem %s6, %s1011
      // Predicated region
      $region45: #{_lambda_.1} parent=43 // pred_check
        %p1013 = pneg %p168
      $region46: #{_lambda_.1} parent=43 // pred_check_branch
        %1015 = sbr.rel (%p1013) target = $region48
      $region47: #{_lambda_.1} parent=43 // pred_region
        _
      $region48: #{_lambda_.1} parent=43 // pred_fallthru
        _
    $region44: #{_lambda_.1} parent=5 // pred_fallthru
      _
    %p1016 = scmp.le.s32.totalorder 2, %s14
    // Predicated region
    $region49: #{_lambda_.1} parent=5 // pred_check
      %p1017 = pneg %p1016
    $region50: #{_lambda_.1} parent=5 // pred_check_branch
      %1019 = sbr.rel (%p1017) target = $region52
    $region51: #{_lambda_.1} parent=5 // pred_region
      %s1020 = ssub.s32 %s14, 2
      // Predicated region
      $region53: #{_lambda_.1} parent=51 // pred_check
        %p1021 = pneg %p174
      $region54: #{_lambda_.1} parent=51 // pred_check_branch
        %1023 = sbr.rel (%p1021) target = $region56
      $region55: #{_lambda_.1} parent=51 // pred_region
        %p1024 = scmp.lt.s32.totalorder %s20, 1
        %s1025 = scalar_select %p1024, %s20, 1
        %s1026 = scalar_lea.vmem %s6, %s1025
      $region56: #{_lambda_.1} parent=51 // pred_fallthru
        _
    $region52: #{_lambda_.1} parent=5 // pred_fallthru
      _
  $region6: #{_lambda_.1} parent=0 // loop_footer
    %s18 = sadd.s32 1, %s14
  $region7: #{_lambda_.1} parent=0 // loop_footer_branch
    %13 = sbr.rel target = $region3
  $region8: #{_lambda_.1} parent=0 // loop_exit
    _

</llo_original>
